<compile_context>
chip_gen: v6e
topology: v6e:2x2x1
jax: 0.10.0
libtpu: 0.0.40
codegen_flags: <defaults>
</compile_context>

<pallas_src>
import functools

import jax
import jax.numpy as jnp
from jax import lax
from jax.experimental import pallas as pl
from jax.experimental.pallas import tpu as pltpu


# --------------------------------------------------------------------------
# helpers
# --------------------------------------------------------------------------
def _pick_tile(dim, align, max_tile):
    """Largest multiple of `align` dividing `dim` and <= max_tile, else the
    full dim (a block equal to the full dim is always layout-legal)."""
    if dim <= max_tile:
        return dim
    t = (max_tile // align) * align
    while t >= align:
        if dim % t == 0:
            return t
        t -= align
    return dim


def _vmem_limit_bytes():
    try:
        cap = getattr(pltpu.get_tpu_info(), "vmem_capacity_bytes", None)
        if cap:
            return int(cap) * 3 // 4          # leave headroom (48 MiB on v7x)
    except Exception:
        pass
    return 48 * 1024 * 1024


# --------------------------------------------------------------------------
# Kernel 1: channel mean + channel max (reads the big input exactly once)
# --------------------------------------------------------------------------
def _pool_kernel(x_ref, avg_ref, max_ref, *, C):
    # x_ref: (C, td, ts)  -- C on a leading axis: the reduction is pure VPU,
    # spatial tile (td, ts) is the lane-dense minor pair.  Two partial
    # accumulators per reduction shorten the serial chains.
    x0 = x_ref[0]
    if C == 1:
        avg_ref[...] = x0
        max_ref[...] = x0
        return
    x1 = x_ref[1]
    s0, s1 = x0, x1
    m0, m1 = x0, x1
    for c in range(2, C, 2):
        xc = x_ref[c]
        s0 = s0 + xc
        m0 = jnp.maximum(m0, xc)
        if c + 1 < C:
            xc1 = x_ref[c + 1]
            s1 = s1 + xc1
            m1 = jnp.maximum(m1, xc1)
    avg_ref[...] = (s0 + s1) * (1.0 / C)
    max_ref[...] = jnp.maximum(m0, m1)


# --------------------------------------------------------------------------
# Kernel 2: 2-in/1-out 3D conv over the padded, lane-flattened plane + sigmoid
# --------------------------------------------------------------------------
def _conv_sigmoid_kernel(w_ref, a_ref, m_ref, o_ref, *scratch,
                         kd, kh, kw, Wp, hoist):
    # w_ref   : SMEM (2*kd*kh*kw,)  flattened (c, dz, dy, dx)
    # a_ref   : VMEM (Dp, L)  padded avg-pool plane stack (L = pad128(Hp*Wp))
    # m_ref   : VMEM (Dp, L)  padded max-pool plane stack
    # o_ref   : VMEM (td, L)  output tile (padded-flat layout)
    # scratch : optional VMEM (2*kd, td, L) for depth-shifted slabs (no-hoist)
    td, L = o_ref.shape
    d0 = pl.multiple_of(pl.program_id(1) * td, td)
    nsl = 2 * kd

    # Stage the 2*kd depth-shifted slabs once (one unaligned sublane-offset
    # read each); hold them in registers when small, else in aligned scratch.
    if hoist:
        slabs = []
        for ref in (a_ref, m_ref):
            for dz in range(kd):
                slabs.append(ref[pl.ds(d0 + dz, td), :])

        def read(s):
            return slabs[s]
    else:
        slab_ref, = scratch
        for c, ref in enumerate((a_ref, m_ref)):
            for dz in range(kd):
                slab_ref[c * kd + dz] = ref[pl.ds(d0 + dz, td), :]

        def read(s):
            return slab_ref[s]

    def wv(s, dy, dx):                       # scalar weight from SMEM
        return w_ref[(s * kh + dy) * kw + dx]

    acc = [None, None]                       # two partial accumulators (ILP)
    for dy in range(kh):
        for dx in range(kw):
            # 2-way tree over the 2*kd depth/channel taps
            t0 = read(0) * wv(0, dy, dx)
            t1 = read(1) * wv(1, dy, dx)
            for s in range(2, nsl, 2):
                t0 = t0 + read(s) * wv(s, dy, dx)
                if s + 1 < nsl:
                    t1 = t1 + read(s + 1) * wv(s + 1, dy, dx)
            t = t0 + t1
            shift = dy * Wp + dx             # (dy,dx) tap == lane roll (XLU)
            if shift:
                t = pltpu.roll(t, L - shift, 1)
            p = (dy * kw + dx) & 1
            acc[p] = t if acc[p] is None else acc[p] + t

    z = acc[0] if acc[1] is None else acc[0] + acc[1]
    o_ref[...] = 1.0 / (1.0 + jnp.exp(-z))   # sigmoid (EUP exp)


# --------------------------------------------------------------------------
# Wrapper
# --------------------------------------------------------------------------
def spatial_attention(x, weight):
    """Forward pass of SpatialAttention.

    x      : (N, C, D, H, W) float32
    weight : (1, 2, kd, kh, kw) float32   (Conv3d(2,1,...), bias=False)
    Returns (N, 1, Do, Ho, Wo) float32 with 'same'-style padding (k//2).
    """
    N, C, D, H, W = x.shape
    _, _, kd, kh, kw = weight.shape
    pd, ph, pw = kd // 2, kh // 2, kw // 2
    Do = D + 2 * pd - kd + 1
    Ho = H + 2 * ph - kh + 1
    Wo = W + 2 * pw - kw + 1
    Dp, Hp, Wp = D + 2 * pd, H + 2 * ph, W + 2 * pw

    vmem = _vmem_limit_bytes()

    # ---------------- kernel 1: channel mean / max ----------------
    HW = H * W
    x3 = x.reshape(N, C, D, HW).astype(jnp.float32)      # free reshape

    td_a = _pick_tile(D, 8, 64)
    ts_a = _pick_tile(HW, 128, 4096)

    pool = pl.pallas_call(
        functools.partial(_pool_kernel, C=C),
        grid=(N, D // td_a, HW // ts_a),
        in_specs=[pl.BlockSpec((None, C, td_a, ts_a),
                               lambda n, i, j: (n, 0, i, j))],
        out_specs=[pl.BlockSpec((None, td_a, ts_a), lambda n, i, j: (n, i, j)),
                   pl.BlockSpec((None, td_a, ts_a), lambda n, i, j: (n, i, j))],
        out_shape=[jax.ShapeDtypeStruct((N, D, HW), jnp.float32),
                   jax.ShapeDtypeStruct((N, D, HW), jnp.float32)],
        compiler_params=pltpu.CompilerParams(
            dimension_semantics=("parallel", "parallel", "parallel"),
            vmem_limit_bytes=vmem),
    )
    avg, mx = pool(x3)

    # ---------------- glue: halo pad the (small, 2/C-sized) pooled maps ----
    # TODO(synk): the zero halo pad is done in XLA glue; fusing it into the
    # pooling kernel would need strided writes into the padded layout.
    HWp = Hp * Wp
    L = ((HWp + 127) // 128) * 128                        # lane-dense plane

    def pad_flat(p):
        p = p.reshape(N, D, H, W)
        p = jnp.pad(p, ((0, 0), (pd, pd), (ph, ph), (pw, pw)))
        p = p.reshape(N, Dp, HWp)
        return jnp.pad(p, ((0, 0), (0, 0), (0, L - HWp)))

    avg_p = pad_flat(avg)
    max_p = pad_flat(mx)

    w_flat = weight.reshape(-1).astype(jnp.float32)       # (2*kd*kh*kw,)

    # ---------------- kernel 2: conv + sigmoid ----------------
    td_b = _pick_tile(Do, 8, 8)
    # Hold the 2*kd depth-shifted slabs in registers when they fit (<=24
    # vregs), else stage them through a VMEM scratch.
    hoist = (2 * kd * td_b * L * 4) <= 24 * 4096
    scratch_shapes = [] if hoist else [pltpu.VMEM((2 * kd, td_b, L),
                                                  jnp.float32)]
    # TODO(synk): for very large H*W the resident (Dp, L) pooled planes could
    # exceed VMEM; a halo-tiled manual-DMA variant would be needed there.
    conv = pl.pallas_call(
        functools.partial(_conv_sigmoid_kernel,
                          kd=kd, kh=kh, kw=kw, Wp=Wp, hoist=hoist),
        grid_spec=pltpu.PrefetchScalarGridSpec(
            num_scalar_prefetch=1,                        # weights -> SMEM
            grid=(N, Do // td_b),
            in_specs=[pl.BlockSpec((None, Dp, L), lambda n, i, w: (n, 0, 0)),
                      pl.BlockSpec((None, Dp, L), lambda n, i, w: (n, 0, 0))],
            out_specs=pl.BlockSpec((None, td_b, L), lambda n, i, w: (n, i, 0)),
            scratch_shapes=scratch_shapes),
        out_shape=jax.ShapeDtypeStruct((N, Do, L), jnp.float32),
        compiler_params=pltpu.CompilerParams(
            dimension_semantics=("parallel", "parallel"),
            vmem_limit_bytes=vmem),
    )
    out_flat = conv(w_flat, avg_p, max_p)

    # ---------------- glue: strip halos from the small output --------------
    out = out_flat[:, :, :HWp].reshape(N, Do, Hp, Wp)[:, :, :Ho, :Wo]
    return out[:, None]                                   # (N, 1, Do, Ho, Wo)


# --------------------------------------------------------------------------
# Pure-JAX reference (for correctness check)
# --------------------------------------------------------------------------
def reference(x, weight):
    kd, kh, kw = weight.shape[2:]
    avg = jnp.mean(x, axis=1, keepdims=True)
    mx = jnp.max(x, axis=1, keepdims=True)
    x2 = jnp.concatenate([avg, mx], axis=1)
    y = lax.conv_general_dilated(
        x2, weight, window_strides=(1, 1, 1),
        padding=((kd // 2, kd // 2), (kh // 2, kh // 2), (kw // 2, kw // 2)),
        dimension_numbers=("NCDHW", "OIDHW", "NCDHW"))
    return jax.nn.sigmoid(y)


if __name__ == "__main__":
    key = jax.random.PRNGKey(0)
    k1, k2 = jax.random.split(key)

    # module config: timepoints=8, att_kernel=7 -> conv kernel (5, 7, 7)
    N, C, timepoints, H, W = 2, 4, 8, 16, 16
    att_kernel = 7
    kd = timepoints // 2 + 1

    x = jax.random.normal(k1, (N, C, timepoints, H, W), jnp.float32)
    weight = jax.random.normal(
        k2, (1, 2, kd, att_kernel, att_kernel), jnp.float32) * 0.05

    out = spatial_attention(x, weight)
    out = jax.block_until_ready(out)

    assert out.shape == (N, 1, timepoints, H, W), out.shape

    ref = reference(x, weight)
    err = float(jnp.max(jnp.abs(out - ref)))
    assert jnp.allclose(out, ref, atol=1e-4, rtol=1e-4), err

    print("KERNEL_OK")
</pallas_src>

<mosaic_0001>
module attributes {stable_mosaic.version = 11 : i64} {
  func.func @_pool_kernel(%arg0: i32, %arg1: i32, %arg2: i32, %arg3: memref<1x4x8x256xf32, #tpu.memory_space<vmem>>, %arg4: memref<1x8x256xf32, #tpu.memory_space<vmem>>, %arg5: memref<1x8x256xf32, #tpu.memory_space<vmem>>) attributes {dimension_semantics = [#tpu.dimension_semantics<parallel>, #tpu.dimension_semantics<parallel>, #tpu.dimension_semantics<parallel>], iteration_bounds = array<i64: 2, 1, 1>, scalar_prefetch = 0 : i64, scratch_operands = 0 : i64, tpu.core_type = #tpu.core_type<tc>, window_params = [{transform_indices = @transform_0, window_bounds = array<i64: 1, 4, 8, 256>}, {transform_indices = @transform_1, window_bounds = array<i64: 1, 8, 256>}, {transform_indices = @transform_2, window_bounds = array<i64: 1, 8, 256>}]} {
    %c0 = arith.constant 0 : index
    %c0_0 = arith.constant 0 : index
    %c0_1 = arith.constant 0 : index
    %c0_2 = arith.constant 0 : index
    %0 = vector.load %arg3[%c0, %c0_0, %c0_1, %c0_2] : memref<1x4x8x256xf32, #tpu.memory_space<vmem>>, vector<1x1x8x256xf32>
    %1 = vector.shape_cast %0 : vector<1x1x8x256xf32> to vector<8x256xf32>
    %c0_3 = arith.constant 0 : index
    %c1 = arith.constant 1 : index
    %c0_4 = arith.constant 0 : index
    %c0_5 = arith.constant 0 : index
    %2 = vector.load %arg3[%c0_3, %c1, %c0_4, %c0_5] : memref<1x4x8x256xf32, #tpu.memory_space<vmem>>, vector<1x1x8x256xf32>
    %3 = vector.shape_cast %2 : vector<1x1x8x256xf32> to vector<8x256xf32>
    %c0_6 = arith.constant 0 : index
    %c2 = arith.constant 2 : index
    %c0_7 = arith.constant 0 : index
    %c0_8 = arith.constant 0 : index
    %4 = vector.load %arg3[%c0_6, %c2, %c0_7, %c0_8] : memref<1x4x8x256xf32, #tpu.memory_space<vmem>>, vector<1x1x8x256xf32>
    %5 = vector.shape_cast %4 : vector<1x1x8x256xf32> to vector<8x256xf32>
    %6 = arith.addf %1, %5 : vector<8x256xf32>
    %7 = arith.maximumf %1, %5 : vector<8x256xf32>
    %c0_9 = arith.constant 0 : index
    %c3 = arith.constant 3 : index
    %c0_10 = arith.constant 0 : index
    %c0_11 = arith.constant 0 : index
    %8 = vector.load %arg3[%c0_9, %c3, %c0_10, %c0_11] : memref<1x4x8x256xf32, #tpu.memory_space<vmem>>, vector<1x1x8x256xf32>
    %9 = vector.shape_cast %8 : vector<1x1x8x256xf32> to vector<8x256xf32>
    %10 = arith.addf %3, %9 : vector<8x256xf32>
    %11 = arith.maximumf %3, %9 : vector<8x256xf32>
    %12 = arith.addf %6, %10 : vector<8x256xf32>
    %cst = arith.constant 2.500000e-01 : f32
    %13 = vector.broadcast %cst : f32 to vector<8x256xf32>
    %14 = arith.mulf %12, %13 : vector<8x256xf32>
    %c0_12 = arith.constant 0 : index
    %c0_13 = arith.constant 0 : index
    %c0_14 = arith.constant 0 : index
    %15 = vector.load %arg4[%c0_12, %c0_13, %c0_14] : memref<1x8x256xf32, #tpu.memory_space<vmem>>, vector<1x8x256xf32>
    %16 = vector.shape_cast %15 : vector<1x8x256xf32> to vector<8x256xf32>
    %17 = vector.shape_cast %14 : vector<8x256xf32> to vector<1x8x256xf32>
    tpu.vector_store %arg4[%c0_12, %c0_13, %c0_14], %17 {strides = array<i32>} : memref<1x8x256xf32, #tpu.memory_space<vmem>>, vector<1x8x256xf32>,
    %18 = arith.maximumf %7, %11 : vector<8x256xf32>
    %c0_15 = arith.constant 0 : index
    %c0_16 = arith.constant 0 : index
    %c0_17 = arith.constant 0 : index
    %19 = vector.load %arg5[%c0_15, %c0_16, %c0_17] : memref<1x8x256xf32, #tpu.memory_space<vmem>>, vector<1x8x256xf32>
    %20 = vector.shape_cast %19 : vector<1x8x256xf32> to vector<8x256xf32>
    %21 = vector.shape_cast %18 : vector<8x256xf32> to vector<1x8x256xf32>
    tpu.vector_store %arg5[%c0_15, %c0_16, %c0_17], %21 {strides = array<i32>} : memref<1x8x256xf32, #tpu.memory_space<vmem>>, vector<1x8x256xf32>,
    return
  }
  func.func @transform_0(%arg0: i32, %arg1: i32, %arg2: i32) -> (i32, i32, i32, i32) {
    %c0_i32 = arith.constant 0 : i32
    %c0_i32_0 = arith.constant 0 : i32
    return %arg0, %c0_i32, %arg1, %arg2 : i32, i32, i32, i32
  }
  func.func @transform_1(%arg0: i32, %arg1: i32, %arg2: i32) -> (i32, i32, i32) {
    %c0_i32 = arith.constant 0 : i32
    return %arg0, %arg1, %arg2 : i32, i32, i32
  }
  func.func @transform_2(%arg0: i32, %arg1: i32, %arg2: i32) -> (i32, i32, i32) {
    %c0_i32 = arith.constant 0 : i32
    return %arg0, %arg1, %arg2 : i32, i32, i32
  }
}

</mosaic_0001>

<llo_original>
// kernel: tpu_custom_call.1
$region0: #{tpu_custom_call.1}
  #allocation0 [shape = 'u32[]', space=smem, size = 0x4, offset = 0x4, fixed_abs, tag = 'smem constant byte address 0x4 - core index']
  #allocation1 [shape = 'u32[144,128]{1,0:T(1,128)}', space=vmem, size = 0x12000, scoped, tag = 'internal scratch']
  %s0 = inlined_call_operand.hbm [shape: f32[2,4,8,256], index: 0, kind: input, shape index: {}]
  %s1 = inlined_call_operand.hbm [shape: f32[2,8,256], index: 1, kind: output, shape index: {0}]
  %s2 = inlined_call_operand.hbm [shape: f32[2,8,256], index: 2, kind: output, shape index: {1}]
  %3 = xla_tuple %s1, %s2
  %s4 = sld [smem:[#allocation0]]
  $region49: #{tpu_custom_call.1} parent=0
    _
  %s6 = ssub.s32 1, %s4
  %s7 = scalar_select 0, %s6, %s4
  $region1: #{tpu_custom_call.1} parent=0
    #allocation2 [shape = 'u8[65536]{0}', space=vmem, size = 0x10000, scoped, tag = 'input window, operand 0']
    #allocation3 [shape = 's32[2]{0}', space=sflag, size = 0x8, scoped, tag = 'scoped memory for tpu_custom_call.1']
    #allocation4 [shape = 's32[2]{0}', space=sflag, size = 0x8, scoped, tag = 'scoped memory for tpu_custom_call.1']
    #allocation5 [shape = 'u8[16384]{0}', space=vmem, size = 0x4000, scoped, tag = 'output window, operand 0']
    #allocation6 [shape = 'u8[16384]{0}', space=vmem, size = 0x4000, scoped, tag = 'output window, operand 1']
    #allocation7 [shape = 's32[2]{0}', space=sflag, size = 0x8, scoped, tag = 'scoped memory for tpu_custom_call.1']
    %8 = vsyncpa [#allocation3], 0
    %s9 = scalar_lea.sflag [#allocation3], 1
    %10 = vsyncpa %s9, 0
    %11 = vsyncpa [#allocation4], 0
    %s12 = scalar_lea.sflag [#allocation4], 1
    %13 = vsyncpa %s12, 0
    %14 = vsyncpa [#allocation7], 0
    %s15 = scalar_lea.sflag [#allocation7], 1
    %16 = vsyncpa %s15, 0
    loop: start=0, step=1, limit=4
    $region2: #{tpu_custom_call.1} parent=1 // loop_pre_header
      _
    $region3: #{tpu_custom_call.1} parent=1 // loop_header
      %s18 = sphi 0, %s22
      %p19 = scmp.ge.s32.totalorder %s18, 4
      %s25 = sphi 0, %s44
      %s26 = sphi 0, %s40
      %s27 = sphi 0, %s36
      %s28 = sphi 0, %s25
      %s29 = sphi 0, %s26
      %s30 = sphi 0, %s27
      %s31 = sphi 0, %s28
      %s32 = sphi 0, %s29
      %s33 = sphi 0, %s30
      %s51 = sphi 0, %s53
      %s54 = sphi 0, %s51
      %s55 = sphi 0, %s54
      %s71 = sphi 0, %s55
      %s81 = sphi 0, %s83
      %s84 = sphi 0, %s81
      %s85 = sphi 0, %s84
      %s101 = sphi 0, %s85
      %s111 = sphi 0, %s113
      %s114 = sphi 0, %s111
      %s115 = sphi 0, %s114
      %s131 = sphi 0, %s115
    $region4: #{tpu_custom_call.1} parent=1 // loop_header_branch
      %21 = sbr.rel (%p19) target = $region8
    $region5: #{tpu_custom_call.1} parent=1 // loop_body
      %s23 = ssub.s32 %s18, 1
      %s24 = ssub.s32 %s18, 2
      %s34 = sadd.s32 1, %s27
      %p35 = scmp.ge.s32.totalorder %s34, 1
      %s36 = scalar_select %p35, 0, %s34
      %s37 = sadd.s32 1, %s26
      %s38 = scalar_select %p35, %s37, %s26
      %p39 = scmp.ge.s32.totalorder %s38, 1
      %s40 = scalar_select %p39, 0, %s38
      %s41 = sadd.s32 1, %s25
      %s42 = scalar_select %p39, %s41, %s25
      %p43 = scmp.ge.s32.totalorder %s42, 2
      %s44 = scalar_select %p43, 0, %s42
      %s45 = ssub.s32 %s25, %s44
      %s46 = ssub.s32 %s26, %s40
      %s47 = sor.u32 %s45, %s46
      %s48 = ssub.s32 %s27, %s36
      %s49 = sor.u32 %s47, %s48
      %p50 = scmp.eq.s32.totalorder %s49, 0
      %s52 = sadd.s32 %s51, 1
      %s53 = scalar_select %p50, %s51, %s52
      %p56 = pneg %p50
      %p57 = scmp.eq.s32.totalorder %s18, 1
      %p58 = por %p56, %p57
      %p59 = scmp.ne.s32.totalorder %s51, %s54
      %p60 = scmp.eq.s32.totalorder %s18, 0
      %p61 = por %p59, %p60
      %p62 = scmp.ne.s32.totalorder %s51, %s54
      %p63 = scmp.eq.s32.totalorder %s23, 1
      %p64 = por %p62, %p63
      %p65 = scmp.ne.s32.totalorder %s54, %s55
      %p66 = scmp.eq.s32.totalorder %s23, 0
      %p67 = por %p65, %p66
      %p68 = scmp.ne.s32.totalorder %s54, %s55
      %p69 = scmp.eq.s32.totalorder %s24, 1
      %p70 = por %p68, %p69
      %p72 = scmp.ne.s32.totalorder %s55, %s71
      %p73 = scmp.eq.s32.totalorder %s24, 0
      %p74 = por %p72, %p73
      %s75 = ssub.s32 %s25, %s44
      %s76 = ssub.s32 %s26, %s40
      %s77 = sor.u32 %s75, %s76
      %s78 = ssub.s32 %s27, %s36
      %s79 = sor.u32 %s77, %s78
      %p80 = scmp.eq.s32.totalorder %s79, 0
      %s82 = sadd.s32 %s81, 1
      %s83 = scalar_select %p80, %s81, %s82
      %p86 = pneg %p80
      %p87 = scmp.eq.s32.totalorder %s18, 1
      %p88 = por %p86, %p87
      %p89 = scmp.ne.s32.totalorder %s81, %s84
      %p90 = scmp.eq.s32.totalorder %s18, 0
      %p91 = por %p89, %p90
      %p92 = scmp.ne.s32.totalorder %s81, %s84
      %p93 = scmp.eq.s32.totalorder %s23, 1
      %p94 = por %p92, %p93
      %p95 = scmp.ne.s32.totalorder %s84, %s85
      %p96 = scmp.eq.s32.totalorder %s23, 0
      %p97 = por %p95, %p96
      %p98 = scmp.ne.s32.totalorder %s84, %s85
      %p99 = scmp.eq.s32.totalorder %s24, 1
      %p100 = por %p98, %p99
      %p102 = scmp.ne.s32.totalorder %s85, %s101
      %p103 = scmp.eq.s32.totalorder %s24, 0
      %p104 = por %p102, %p103
      %s105 = ssub.s32 %s25, %s44
      %s106 = ssub.s32 %s26, %s40
      %s107 = sor.u32 %s105, %s106
      %s108 = ssub.s32 %s27, %s36
      %s109 = sor.u32 %s107, %s108
      %p110 = scmp.eq.s32.totalorder %s109, 0
      %s112 = sadd.s32 %s111, 1
      %s113 = scalar_select %p110, %s111, %s112
      %p116 = pneg %p110
      %p117 = scmp.eq.s32.totalorder %s18, 1
      %p118 = por %p116, %p117
      %p119 = scmp.ne.s32.totalorder %s111, %s114
      %p120 = scmp.eq.s32.totalorder %s18, 0
      %p121 = por %p119, %p120
      %p122 = scmp.ne.s32.totalorder %s111, %s114
      %p123 = scmp.eq.s32.totalorder %s23, 1
      %p124 = por %p122, %p123
      %p125 = scmp.ne.s32.totalorder %s114, %s115
      %p126 = scmp.eq.s32.totalorder %s23, 0
      %p127 = por %p125, %p126
      %p128 = scmp.ne.s32.totalorder %s114, %s115
      %p129 = scmp.eq.s32.totalorder %s24, 1
      %p130 = por %p128, %p129
      %p132 = scmp.ne.s32.totalorder %s115, %s131
      %p133 = scmp.eq.s32.totalorder %s24, 0
      %p134 = por %p132, %p133
      %p135 = scmp.le.s32.totalorder 1, %s18
      %p136 = scmp.lt.s32.totalorder %s18, 3
      %p137 = pnand %p135, %p136
      %p138 = pneg %p137
      // Predicated region
      $region9: #{tpu_custom_call.1} parent=5 // pred_check
        _
      $region10: #{tpu_custom_call.1} parent=5 // pred_check_branch
        %140 = sbr.rel (%p137) target = $region12
      $region11: #{tpu_custom_call.1} parent=5 // pred_region
        %s141 = ssub.s32 %s18, 1
      $region12: #{tpu_custom_call.1} parent=5 // pred_fallthru
        _
      %p142 = scmp.lt.s32.totalorder %s18, 2
      // Predicated region
      $region13: #{tpu_custom_call.1} parent=5 // pred_check
        %p143 = pneg %p142
      $region14: #{tpu_custom_call.1} parent=5 // pred_check_branch
        %145 = sbr.rel (%p143) target = $region16
      $region15: #{tpu_custom_call.1} parent=5 // pred_region
        // Predicated region
        $region17: #{tpu_custom_call.1} parent=15 // pred_check
          %p146 = pneg %p61
        $region18: #{tpu_custom_call.1} parent=15 // pred_check_branch
          %148 = sbr.rel (%p146) target = $region20
        $region19: #{tpu_custom_call.1} parent=15 // pred_region
          %s149 = sand.u32 %s51, 1
          %s150 = scalar_lea.sflag [#allocation3], %s149
          %s151 = sand.u32 %s51, 1
          %s152 = smul.addr %s151, 64
          %s153 = scalar_lea.vmem [#allocation2], %s152
          %s154 = smul.u32 2, %s27
          %s156 = ssub.s32 1024, 1024
          %157 = vsyncadd %s150, %s156
          %s158 = smul.addr %s26, 2
          %s159 = sadd.s32 %s154, %s158
          %s160 = smul.addr %s25, 8
          %s161 = sadd.s32 %s159, %s160
          %s162 = smul.addr %s161, 128
          %s163 = scalar_lea.hbm %s0, %s162
          %s164 = sshll.u32 %s153, 4
          %s165 = int_to_ptr.vmem [resolvable:$true] %s164
          %170 = dma.hbm_to_vmem [thread:$0]  %s163, 1024, %s165, %s150, 256, 256, 16
        $region20: #{tpu_custom_call.1} parent=15 // pred_fallthru
          _
      $region16: #{tpu_custom_call.1} parent=5 // pred_fallthru
        _
      %p171 = scmp.le.s32.totalorder 1, %s18
      %p172 = scmp.lt.s32.totalorder %s18, 3
      %p173 = pnand %p171, %p172
      %p174 = pneg %p173
      // Predicated region
      $region21: #{tpu_custom_call.1} parent=5 // pred_check
        _
      $region22: #{tpu_custom_call.1} parent=5 // pred_check_branch
        %176 = sbr.rel (%p173) target = $region24
      $region23: #{tpu_custom_call.1} parent=5 // pred_region
        %s177 = ssub.s32 %s18, 1
        %s178 = sand.u32 %s54, 1
        %s179 = scalar_lea.sflag [#allocation3], %s178
        %s180 = sand.u32 %s54, 1
        %s181 = smul.addr %s180, 64
        %s182 = scalar_lea.vmem [#allocation2], %s181
        // Predicated region
        $region25: #{tpu_custom_call.1} parent=23 // pred_check
          %p183 = pneg %p67
        $region26: #{tpu_custom_call.1} parent=23 // pred_check_branch
          %185 = sbr.rel (%p183) target = $region28
        $region27: #{tpu_custom_call.1} parent=23 // pred_region
          %186 = dma.done %s179, 1024
        $region28: #{tpu_custom_call.1} parent=23 // pred_fallthru
          _
        %s187 = sand.u32 %s54, 1
        %s188 = scalar_lea.sflag [#allocation3], %s187
        %s189 = sand.u32 %s54, 1
        %s190 = smul.addr %s189, 64
        %s191 = scalar_lea.vmem [#allocation2], %s190
        %p192 = pneg %p67
        %p193 = pneg %p64
        %p194 = pneg %p97
        %p195 = pneg %p94
        %s196 = sand.u32 %s84, 1
        %s197 = scalar_lea.sflag [#allocation4], %s196
        %s198 = sand.u32 %s84, 1
        %s199 = smul.addr %s198, 16
        %s200 = scalar_lea.vmem [#allocation5], %s199
        %p201 = pneg %p127
        %p202 = pneg %p124
        %s203 = sand.u32 %s114, 1
        %s204 = scalar_lea.sflag [#allocation7], %s203
        %s205 = sand.u32 %s114, 1
        %s206 = smul.addr %s205, 16
        %s207 = scalar_lea.vmem [#allocation6], %s206
        %s208 = smul.u32 2, %s30
        %s209 = smul.u32 2, %s30
        %s210 = smul.u32 2, %s30
        %v211 = vld [vmem:[%s182] sm:$0xff]
        %v212 = vld [vmem:[%s182 + $0x8] sm:$0xff]
        %s213 = scalar_lea.vmem %s182, 16 [#allocation2]
        %v214 = vld [vmem:[%s213] sm:$0xff]
        %v215 = vld [vmem:[%s213 + $0x8] sm:$0xff]
        %s216 = scalar_lea.vmem %s182, 32 [#allocation2]
        %v217 = vld [vmem:[%s216] sm:$0xff]
        %v218 = vld [vmem:[%s216 + $0x8] sm:$0xff]
        %v219 = vadd.f32 %v211, %v217
        %v220 = vadd.f32 %v212, %v218
        %v221 = vmax.f32 %v211, %v217
        %v222 = vmax.f32 %v212, %v218
        %s223 = scalar_lea.vmem %s182, 48 [#allocation2]
        %v224 = vld [vmem:[%s223] sm:$0xff]
        %v225 = vld [vmem:[%s223 + $0x8] sm:$0xff]
        %v226 = vadd.f32 %v214, %v224
        %v227 = vadd.f32 %v215, %v225
        %v228 = vmax.f32 %v214, %v224
        %v229 = vmax.f32 %v215, %v225
        %v230 = vadd.f32 %v219, %v226
        %v231 = vadd.f32 %v220, %v227
        %v232 = vmul.f32 %v230, 0.25
        %v233 = vmul.f32 %v231, 0.25
        %234 = vst [vmem:[%s200] sm:$0xff] %v232
        %235 = vst [vmem:[%s200 + $0x8] sm:$0xff] %v233
        %v236 = vmax.f32 %v221, %v228
        %v237 = vmax.f32 %v222, %v229
        %238 = vst [vmem:[%s207] sm:$0xff] %v236
        %239 = vst [vmem:[%s207 + $0x8] sm:$0xff] %v237
        %s240 = sand.u32 %s84, 1
        %s241 = scalar_lea.sflag [#allocation4], %s240
        %s242 = sand.u32 %s84, 1
        %s243 = smul.addr %s242, 16
        %s244 = scalar_lea.vmem [#allocation5], %s243
        %s245 = sand.u32 %s114, 1
        %s246 = scalar_lea.sflag [#allocation7], %s245
        %s247 = sand.u32 %s114, 1
        %s248 = smul.addr %s247, 16
        %s249 = scalar_lea.vmem [#allocation6], %s248
        // Predicated region
        $region29: #{tpu_custom_call.1} parent=23 // pred_check
          %p250 = pneg %p94
        $region30: #{tpu_custom_call.1} parent=23 // pred_check_branch
          %252 = sbr.rel (%p250) target = $region32
        $region31: #{tpu_custom_call.1} parent=23 // pred_region
          %s253 = smul.u32 2, %s30
          %s255 = ssub.s32 256, 256
          %256 = vsyncadd %s241, %s255
          %s257 = smul.addr %s29, 2
          %s258 = sadd.s32 %s253, %s257
          %s259 = smul.addr %s28, 2
          %s260 = sadd.s32 %s258, %s259
          %s261 = smul.addr %s260, 128
          %s262 = scalar_lea.hbm %s1, %s261
          %s264 = sshll.u32 %s244, 4
          %s265 = int_to_ptr.vmem [resolvable:$true] %s264
          %267 = dma.vmem_to_hbm [thread:$0]  %s265, 256, %s262, %s241
        $region32: #{tpu_custom_call.1} parent=23 // pred_fallthru
          _
        // Predicated region
        $region33: #{tpu_custom_call.1} parent=23 // pred_check
          %p268 = pneg %p124
        $region34: #{tpu_custom_call.1} parent=23 // pred_check_branch
          %270 = sbr.rel (%p268) target = $region36
        $region35: #{tpu_custom_call.1} parent=23 // pred_region
          %s271 = smul.u32 2, %s30
          %s273 = ssub.s32 256, 256
          %274 = vsyncadd %s246, %s273
          %s275 = smul.addr %s29, 2
          %s276 = sadd.s32 %s271, %s275
          %s277 = smul.addr %s28, 2
          %s278 = sadd.s32 %s276, %s277
          %s279 = smul.addr %s278, 128
          %s280 = scalar_lea.hbm %s2, %s279
          %s282 = sshll.u32 %s249, 4
          %s283 = int_to_ptr.vmem [resolvable:$true] %s282
          %285 = dma.vmem_to_hbm [thread:$0]  %s283, 256, %s280, %s246
        $region36: #{tpu_custom_call.1} parent=23 // pred_fallthru
          _
      $region24: #{tpu_custom_call.1} parent=5 // pred_fallthru
        _
      %p286 = scmp.le.s32.totalorder 2, %s18
      // Predicated region
      $region37: #{tpu_custom_call.1} parent=5 // pred_check
        %p287 = pneg %p286
      $region38: #{tpu_custom_call.1} parent=5 // pred_check_branch
        %289 = sbr.rel (%p287) target = $region40
      $region39: #{tpu_custom_call.1} parent=5 // pred_region
        %s290 = ssub.s32 %s18, 2
        // Predicated region
        $region41: #{tpu_custom_call.1} parent=39 // pred_check
          %p291 = pneg %p100
        $region42: #{tpu_custom_call.1} parent=39 // pred_check_branch
          %293 = sbr.rel (%p291) target = $region44
        $region43: #{tpu_custom_call.1} parent=39 // pred_region
          %s294 = sand.u32 %s85, 1
          %s295 = scalar_lea.sflag [#allocation4], %s294
          %s296 = sand.u32 %s85, 1
          %s297 = smul.addr %s296, 16
          %s298 = scalar_lea.vmem [#allocation5], %s297
          %299 = dma.done %s295, 256
        $region44: #{tpu_custom_call.1} parent=39 // pred_fallthru
          _
        // Predicated region
        $region45: #{tpu_custom_call.1} parent=39 // pred_check
          %p300 = pneg %p130
        $region46: #{tpu_custom_call.1} parent=39 // pred_check_branch
          %302 = sbr.rel (%p300) target = $region48
        $region47: #{tpu_custom_call.1} parent=39 // pred_region
          %s303 = sand.u32 %s115, 1
          %s304 = scalar_lea.sflag [#allocation7], %s303
          %s305 = sand.u32 %s115, 1
          %s306 = smul.addr %s305, 16
          %s307 = scalar_lea.vmem [#allocation6], %s306
          %308 = dma.done %s304, 256
        $region48: #{tpu_custom_call.1} parent=39 // pred_fallthru
          _
      $region40: #{tpu_custom_call.1} parent=5 // pred_fallthru
        _
    $region6: #{tpu_custom_call.1} parent=1 // loop_footer
      %s22 = sadd.s32 1, %s18
    $region7: #{tpu_custom_call.1} parent=1 // loop_footer_branch
      %17 = sbr.rel target = $region3
    $region8: #{tpu_custom_call.1} parent=1 // loop_exit
      _
    %309 = vsyncpa [#allocation3], 1
    %s310 = scalar_lea.sflag [#allocation3], 1
    %311 = vsyncpa %s310, 1
    %312 = vsyncpa [#allocation4], 1
    %s313 = scalar_lea.sflag [#allocation4], 1
    %314 = vsyncpa %s313, 1
    %315 = vsyncpa [#allocation7], 1
    %s316 = scalar_lea.sflag [#allocation7], 1
    %317 = vsyncpa %s316, 1

</llo_original>
